<compile_context>
chip_gen: v7x
topology: tpu7x:2x2x1
jax: 0.10.0
libtpu: 0.0.40
codegen_flags: <defaults>
</compile_context>

<pallas_src>
import functools

import jax
import jax.numpy as jnp
from jax.experimental import pallas as pl
from jax.experimental.pallas import tpu as pltpu


_LANE = 128
_SUBLANE = 8


def _round_up(n, m):
    return ((n + m - 1) // m) * m


def _vmem_budget_bytes():
    """~70% of per-TensorCore VMEM (generation aware: 64 MiB v7x, 128 MiB v5e/v6e)."""
    try:
        cap = pltpu.get_tpu_info().vmem_capacity_bytes
    except Exception:
        cap = 64 * 1024 * 1024          # conservative (v7x-sized) fallback
    return int(cap * 0.70)


def _vmem_estimate(tb, th, in_pad, h_pad, cd_size, out_size):
    """Rough per-step VMEM: double-buffered I/O blocks + f32 temporaries."""
    k_pad = in_pad + h_pad
    io = (tb * k_pad * cd_size           # xh tile
          + k_pad * 2 * th * cd_size     # w_rz tile
          + in_pad * th * cd_size        # w_xn tile
          + h_pad * th * cd_size         # w_hn tile
          + 4 * th * 4                   # f32 biases
          + tb * th * out_size)          # output tile
    temps = 8 * tb * th * 4              # rz / xn / hn / n / h_blend f32 temps
    return 2 * io + temps


def _th_candidates(h_pad):
    return sorted([d for d in range(_LANE, h_pad + 1, _LANE) if h_pad % d == 0],
                  reverse=True)


def _tb_candidates(b, block_b):
    if b <= block_b:
        return [b]
    cands = []
    t = max(_SUBLANE, (block_b // _SUBLANE) * _SUBLANE)
    while t >= _SUBLANE:
        if not cands or t != cands[-1]:
            cands.append(t)
        if t == _SUBLANE:
            break
        t = max(_SUBLANE, ((t // 2) // _SUBLANE) * _SUBLANE)
    return cands


def _pad2(a, rows, cols):
    r, c = a.shape
    if (r, c) == (rows, cols):
        return a
    return jnp.pad(a, ((0, rows - r), (0, cols - c)))


def _interleave_rz(a_r, a_z, th):
    """Tile-interleave r/z along the last dim so column block j is [r_j | z_j]."""
    rows, h_pad = a_r.shape
    n = h_pad // th
    stacked = jnp.stack([a_r.reshape(rows, n, th), a_z.reshape(rows, n, th)], axis=2)
    return stacked.reshape(rows, 2 * h_pad)


def pack_gru_cell_params(wx, bx, wh, bh, *, compute_dtype=jnp.bfloat16,
                         block_h=None, vmem_budget=None):
    """Pack / pad GRU weights once (hoist this out of any per-timestep scan).

    wx:(In,3H)  bx:(1,3H)  wh:(H,3H)  bh:(1,3H); gate order (r, z, n).
    Returns (params_tuple, meta_dict) for gru_cell_packed.
    """
    In, three_h = wx.shape
    H = three_h // 3
    cd = jnp.dtype(compute_dtype)
    in_pad = _round_up(In, _LANE)
    h_pad = _round_up(H, _LANE)
    k_pad = in_pad + h_pad
    if vmem_budget is None:
        vmem_budget = _vmem_budget_bytes()

    # TH: largest 128-multiple divisor of h_pad whose weight tiles fit the VMEM
    # budget (nominal 128-row activation tile).  TH == h_pad => every weight
    # index map is constant in the batch axis, so weights stream from HBM once.
    cands = _th_candidates(h_pad)
    if block_h is not None:
        limit = max(int(block_h), _LANE)
        cands = [c for c in cands if c <= limit] or [_LANE]
    th = cands[-1]
    for c in cands:
        if _vmem_estimate(128, c, in_pad, h_pad, cd.itemsize, 4) <= 0.8 * vmem_budget:
            th = c
            break

    # ---- gate split + zero padding (lane multiples) ------------------------
    wx_r, wx_z, wx_n = wx[:, :H], wx[:, H:2 * H], wx[:, 2 * H:]
    wh_r, wh_z, wh_n = wh[:, :H], wh[:, H:2 * H], wh[:, 2 * H:]
    bx_r, bx_z, bx_n = bx[:, :H], bx[:, H:2 * H], bx[:, 2 * H:]
    bh_r, bh_z, bh_n = bh[:, :H], bh[:, H:2 * H], bh[:, 2 * H:]

    w_r = jnp.concatenate([_pad2(wx_r, in_pad, h_pad), _pad2(wh_r, h_pad, h_pad)], axis=0)
    w_z = jnp.concatenate([_pad2(wx_z, in_pad, h_pad), _pad2(wh_z, h_pad, h_pad)], axis=0)
    w_rz = _interleave_rz(w_r, w_z, th).astype(cd)             # (K_pad, 2*H_pad)
    w_xn = _pad2(wx_n, in_pad, h_pad).astype(cd)               # (In_pad, H_pad)
    w_hn = _pad2(wh_n, h_pad, h_pad).astype(cd)                # (H_pad, H_pad)

    b_r = _pad2((bx_r + bh_r).astype(jnp.float32), 1, h_pad)
    b_z = _pad2((bx_z + bh_z).astype(jnp.float32), 1, h_pad)
    b_rz = _interleave_rz(b_r, b_z, th)                        # (1, 2*H_pad) f32
    b_xn = _pad2(bx_n.astype(jnp.float32), 1, h_pad)
    b_hn = _pad2(bh_n.astype(jnp.float32), 1, h_pad)

    params = (w_rz, w_xn, w_hn, b_rz, b_xn, b_hn)
    meta = dict(input_size=In, hidden_size=H, in_pad=in_pad, h_pad=h_pad,
                k_pad=k_pad, th=th, compute_dtype=cd, vmem_budget=int(vmem_budget))
    return params, meta


def _gru_cell_kernel(xh_ref, w_rz_ref, w_xn_ref, w_hn_ref,
                     b_rz_ref, b_xn_ref, b_hn_ref, out_ref,
                     *, in_pad, th, h_axis):
    """One (batch_tile, hidden_column_tile) block of the GRU cell."""
    xh = xh_ref[...]                               # (TB, K_pad), matmul dtype
    x = xh[:, :in_pad]                             # lane-aligned static views
    h = xh[:, in_pad:]

    # r/z gates: one fused [x|h] @ [w_r_j | w_z_j] matmul, f32 accumulation.
    rz = jnp.dot(xh, w_rz_ref[...], preferred_element_type=jnp.float32) + b_rz_ref[...]
    r = jax.nn.sigmoid(rz[:, :th])
    z = jax.nn.sigmoid(rz[:, th:])

    # n gate: hn must be scaled by r before the add, so keep its matmul split.
    xn = jnp.dot(x, w_xn_ref[...], preferred_element_type=jnp.float32) + b_xn_ref[...]
    hn = jnp.dot(h, w_hn_ref[...], preferred_element_type=jnp.float32) + b_hn_ref[...]
    n = jnp.tanh(xn + r * hn)

    # Blend h tile: re-read this block's hidden columns from the resident xh
    # tile (no separate f32 hidden stream) and cast to f32 on the VPU.
    j = pl.program_id(h_axis)
    off = pl.multiple_of(in_pad + j * th, 128)
    h_t = xh_ref[:, pl.ds(off, th)].astype(jnp.float32)
    out_ref[...] = (n + z * (h_t - n)).astype(out_ref.dtype)


def gru_cell_packed(x, hidden, params, meta, *, block_b=256):
    """GRU cell forward with pre-packed weights (see pack_gru_cell_params)."""
    B, In = x.shape
    Bh, H = hidden.shape
    assert B == Bh and In == meta["input_size"] and H == meta["hidden_size"]
    w_rz, w_xn, w_hn, b_rz, b_xn, b_hn = params
    in_pad, h_pad, k_pad, th = meta["in_pad"], meta["h_pad"], meta["k_pad"], meta["th"]
    cd = meta["compute_dtype"]
    budget = meta["vmem_budget"]
    out_dtype = hidden.dtype
    out_size = jnp.dtype(out_dtype).itemsize

    # Single de-duplicated, lane-padded activation stream [x | h].
    xh = jnp.concatenate([_pad2(x, B, in_pad), _pad2(hidden, B, h_pad)],
                         axis=1).astype(cd)                      # (B, K_pad)

    # Batch tile: largest candidate that fits the VMEM budget with this TH.
    tb_cands = _tb_candidates(B, block_b)
    tb = tb_cands[-1]
    for c in tb_cands:
        if _vmem_estimate(c, th, in_pad, h_pad, cd.itemsize, out_size) <= 0.8 * budget:
            tb = c
            break

    n_b = pl.cdiv(B, tb)
    n_h = h_pad // th

    # Grid order: pick whichever re-streams fewer HBM bytes.
    #   batch-major: weights * n_b + activations   (activations resident over j)
    #   h-major:     weights + activations * n_h   (weights resident over i)
    act_bytes = B * k_pad * cd.itemsize
    w_bytes = (w_rz.size + w_xn.size + w_hn.size) * cd.itemsize
    batch_major = (w_bytes * n_b + act_bytes) <= (w_bytes + act_bytes * n_h)
    if batch_major:
        grid = (n_b, n_h)
        bix = lambda i, j: i
        hix = lambda i, j: j
        h_axis = 1
    else:
        grid = (n_h, n_b)
        bix = lambda i, j: j
        hix = lambda i, j: i
        h_axis = 0

    flops = 2 * B * (k_pad * 2 * h_pad + in_pad * h_pad + h_pad * h_pad)
    bytes_accessed = int(xh.size * cd.itemsize + w_bytes
                         + (b_rz.size + b_xn.size + b_hn.size) * 4
                         + B * h_pad * out_size)

    kernel = functools.partial(_gru_cell_kernel, in_pad=in_pad, th=th, h_axis=h_axis)
    out = pl.pallas_call(
        kernel,
        out_shape=jax.ShapeDtypeStruct((B, h_pad), out_dtype),
        grid=grid,
        in_specs=[
            pl.BlockSpec((tb, k_pad), lambda i, j: (bix(i, j), 0)),       # xh
            pl.BlockSpec((k_pad, 2 * th), lambda i, j: (0, hix(i, j))),   # w_rz
            pl.BlockSpec((in_pad, th), lambda i, j: (0, hix(i, j))),      # w_xn
            pl.BlockSpec((h_pad, th), lambda i, j: (0, hix(i, j))),       # w_hn
            pl.BlockSpec((1, 2 * th), lambda i, j: (0, hix(i, j))),       # b_rz
            pl.BlockSpec((1, th), lambda i, j: (0, hix(i, j))),           # b_xn
            pl.BlockSpec((1, th), lambda i, j: (0, hix(i, j))),           # b_hn
        ],
        out_specs=pl.BlockSpec((tb, th), lambda i, j: (bix(i, j), hix(i, j))),
        compiler_params=pltpu.CompilerParams(
            dimension_semantics=("parallel", "parallel"),
            vmem_limit_bytes=int(budget),
        ),
        cost_estimate=pl.CostEstimate(
            flops=int(flops),
            transcendentals=int(3 * B * h_pad),
            bytes_accessed=bytes_accessed,
        ),
    )(xh, w_rz, w_xn, w_hn, b_rz, b_xn, b_hn)

    return out[:, :H] if h_pad != H else out


def gru_cell(x, hidden, wx, bx, wh, bh, *, compute_dtype=jnp.bfloat16,
             block_b=256, block_h=None):
    """Convenience wrapper: pack (once) + run.  For scans, hoist the packing."""
    params, meta = pack_gru_cell_params(wx, bx, wh, bh,
                                        compute_dtype=compute_dtype,
                                        block_h=block_h)
    return gru_cell_packed(x, hidden, params, meta, block_b=block_b)


def gru_cell_ref(x, hidden, wx, bx, wh, bh, compute_dtype=jnp.float32):
    """Pure-JAX reference; compute_dtype mirrors the kernel's matmul/blend precision."""
    cd = compute_dtype
    gx = jnp.dot(x.astype(cd), wx.astype(cd), preferred_element_type=jnp.float32) + bx
    gh = jnp.dot(hidden.astype(cd), wh.astype(cd), preferred_element_type=jnp.float32) + bh
    H = hidden.shape[-1]
    xr, xz, xn = gx[:, :H], gx[:, H:2 * H], gx[:, 2 * H:]
    hr, hz, hn = gh[:, :H], gh[:, H:2 * H], gh[:, 2 * H:]
    r = jax.nn.sigmoid(xr + hr)
    z = jax.nn.sigmoid(xz + hz)
    n = jnp.tanh(xn + r * hn)
    h_b = hidden.astype(cd).astype(jnp.float32)   # kernel blends with matmul-dtype h
    return (1.0 - z) * n + z * h_b


if __name__ == "__main__":
    def make_params(key, input_size, hidden_size):
        internal = 3 * hidden_size
        kwx, kbx, kwh, kbh = jax.random.split(key, 4)
        bound_x = 1.0 / (input_size ** 0.5)
        bound_h = 1.0 / (hidden_size ** 0.5)
        # Conv2d weight (3H, In, 1, 1) squeezed & transposed -> (In, 3H).
        wx = jax.random.uniform(kwx, (input_size, internal), jnp.float32, -bound_x, bound_x)
        bx = jax.random.uniform(kbx, (1, internal), jnp.float32, -bound_x, bound_x)
        wh = jax.random.uniform(kwh, (hidden_size, internal), jnp.float32, -bound_h, bound_h)
        bh = jax.random.uniform(kbh, (1, internal), jnp.float32, -bound_h, bound_h)
        return wx, bx, wh, bh

    key = jax.random.PRNGKey(0)
    k0, k1, k2, k3 = jax.random.split(key, 4)

    # ---- demo-scale case --------------------------------------------------
    input_size, hidden_size, batch = 16, 32, 8
    wx, bx, wh, bh = make_params(k0, input_size, hidden_size)
    x = jax.random.normal(k1, (batch, input_size), jnp.float32)
    hidden = jax.random.normal(k2, (batch, hidden_size), jnp.float32)

    run_f32 = jax.jit(functools.partial(gru_cell, compute_dtype=jnp.float32))
    run_bf16 = jax.jit(functools.partial(gru_cell, compute_dtype=jnp.bfloat16))

    out_f32 = jax.block_until_ready(run_f32(x, hidden, wx, bx, wh, bh))
    ref_f32 = gru_cell_ref(x, hidden, wx, bx, wh, bh)
    assert out_f32.shape == (batch, hidden_size)
    assert jnp.allclose(out_f32, ref_f32, atol=1e-4, rtol=1e-4)

    out_bf16 = jax.block_until_ready(run_bf16(x, hidden, wx, bx, wh, bh))
    ref_bf16 = gru_cell_ref(x, hidden, wx, bx, wh, bh, compute_dtype=jnp.bfloat16)
    assert out_bf16.shape == (batch, hidden_size)
    assert jnp.allclose(out_bf16, ref_bf16, atol=2e-3, rtol=2e-3)
    assert jnp.allclose(out_bf16, ref_f32, atol=5e-2, rtol=5e-2)

    # ---- non-multiple shapes, partial batch tile, n_h > 1 ------------------
    # Exercises padding, the tile-interleaved r/z weights, the dynamic blend
    # slice, and the weight-resident (h-major) grid order.
    in2, h2, b2 = 20, 200, 12
    wx2, bx2, wh2, bh2 = make_params(k3, in2, h2)
    x2 = jax.random.normal(k1, (b2, in2), jnp.float32)
    h2_in = jax.random.normal(k2, (b2, h2), jnp.float32)
    run2 = jax.jit(functools.partial(gru_cell, compute_dtype=jnp.float32,
                                     block_b=8, block_h=128))
    out2 = jax.block_until_ready(run2(x2, h2_in, wx2, bx2, wh2, bh2))
    ref2 = gru_cell_ref(x2, h2_in, wx2, bx2, wh2, bh2)
    assert out2.shape == (b2, h2)
    assert jnp.allclose(out2, ref2, atol=1e-4, rtol=1e-4)

    print("KERNEL_OK")
</pallas_src>

<mosaic_0001>
module attributes {stable_mosaic.version = 11 : i64} {
  func.func @_gru_cell_kernel(%arg0: i32, %arg1: i32, %arg2: memref<8x256xf32, #tpu.memory_space<vmem>>, %arg3: memref<256x256xf32, #tpu.memory_space<vmem>>, %arg4: memref<128x128xf32, #tpu.memory_space<vmem>>, %arg5: memref<128x128xf32, #tpu.memory_space<vmem>>, %arg6: memref<1x256xf32, #tpu.memory_space<vmem>>, %arg7: memref<1x128xf32, #tpu.memory_space<vmem>>, %arg8: memref<1x128xf32, #tpu.memory_space<vmem>>, %arg9: memref<8x128xf32, #tpu.memory_space<vmem>>) attributes {dimension_semantics = [#tpu.dimension_semantics<parallel>, #tpu.dimension_semantics<parallel>], iteration_bounds = array<i64: 1, 1>, scalar_prefetch = 0 : i64, scratch_operands = 0 : i64, tpu.core_type = #tpu.core_type<tc>, window_params = [{transform_indices = @transform_0, window_bounds = array<i64: 8, 256>}, {transform_indices = @transform_1, window_bounds = array<i64: 256, 256>}, {transform_indices = @transform_2, window_bounds = array<i64: 128, 128>}, {transform_indices = @transform_3, window_bounds = array<i64: 128, 128>}, {transform_indices = @transform_4, window_bounds = array<i64: 1, 256>}, {transform_indices = @transform_5, window_bounds = array<i64: 1, 128>}, {transform_indices = @transform_6, window_bounds = array<i64: 1, 128>}, {transform_indices = @transform_7, window_bounds = array<i64: 8, 128>}]} {
    %c0 = arith.constant 0 : index
    %c0_0 = arith.constant 0 : index
    %0 = vector.load %arg2[%c0, %c0_0] : memref<8x256xf32, #tpu.memory_space<vmem>>, vector<8x256xf32>
    %1 = vector.extract_strided_slice %0 {offsets = [0, 0], sizes = [8, 128], strides = [1, 1]} : vector<8x256xf32> to vector<8x128xf32>
    %2 = vector.extract_strided_slice %0 {offsets = [0, 128], sizes = [8, 128], strides = [1, 1]} : vector<8x256xf32> to vector<8x128xf32>
    %c0_1 = arith.constant 0 : index
    %c0_2 = arith.constant 0 : index
    %3 = vector.load %arg3[%c0_1, %c0_2] : memref<256x256xf32, #tpu.memory_space<vmem>>, vector<256x256xf32>
    %cst = arith.constant dense<0.000000e+00> : vector<8x256xf32>
    %4 = tpu.matmul %0, %3, %cst {dimension_numbers = #tpu.dot_dimension_numbers<[1], [0], [0], [1], [0, 0, 1, 1], [], []>} : vector<8x256xf32>, vector<256x256xf32>, vector<8x256xf32> -> vector<8x256xf32>
    %c0_3 = arith.constant 0 : index
    %c0_4 = arith.constant 0 : index
    %5 = vector.load %arg6[%c0_3, %c0_4] : memref<1x256xf32, #tpu.memory_space<vmem>>, vector<1x256xf32>
    %6 = vector.broadcast %5 : vector<1x256xf32> to vector<8x256xf32>
    %7 = arith.addf %4, %6 : vector<8x256xf32>
    %8 = vector.extract_strided_slice %7 {offsets = [0, 0], sizes = [8, 128], strides = [1, 1]} : vector<8x256xf32> to vector<8x128xf32>
    %9 = arith.negf %8 : vector<8x128xf32>
    %10 = math.exp %9 : vector<8x128xf32>
    %cst_5 = arith.constant 1.000000e+00 : f32
    %11 = vector.broadcast %cst_5 : f32 to vector<8x128xf32>
    %12 = arith.addf %11, %10 : vector<8x128xf32>
    %13 = arith.divf %11, %12 : vector<8x128xf32>
    %14 = vector.extract_strided_slice %7 {offsets = [0, 128], sizes = [8, 128], strides = [1, 1]} : vector<8x256xf32> to vector<8x128xf32>
    %15 = arith.negf %14 : vector<8x128xf32>
    %16 = math.exp %15 : vector<8x128xf32>
    %cst_6 = arith.constant 1.000000e+00 : f32
    %17 = vector.broadcast %cst_6 : f32 to vector<8x128xf32>
    %18 = arith.addf %17, %16 : vector<8x128xf32>
    %19 = arith.divf %17, %18 : vector<8x128xf32>
    %c0_7 = arith.constant 0 : index
    %c0_8 = arith.constant 0 : index
    %20 = vector.load %arg4[%c0_7, %c0_8] : memref<128x128xf32, #tpu.memory_space<vmem>>, vector<128x128xf32>
    %cst_9 = arith.constant dense<0.000000e+00> : vector<8x128xf32>
    %21 = tpu.matmul %1, %20, %cst_9 {dimension_numbers = #tpu.dot_dimension_numbers<[1], [0], [0], [1], [0, 0, 1, 1], [], []>} : vector<8x128xf32>, vector<128x128xf32>, vector<8x128xf32> -> vector<8x128xf32>
    %c0_10 = arith.constant 0 : index
    %c0_11 = arith.constant 0 : index
    %22 = vector.load %arg7[%c0_10, %c0_11] : memref<1x128xf32, #tpu.memory_space<vmem>>, vector<1x128xf32>
    %23 = vector.broadcast %22 : vector<1x128xf32> to vector<8x128xf32>
    %24 = arith.addf %21, %23 : vector<8x128xf32>
    %c0_12 = arith.constant 0 : index
    %c0_13 = arith.constant 0 : index
    %25 = vector.load %arg5[%c0_12, %c0_13] : memref<128x128xf32, #tpu.memory_space<vmem>>, vector<128x128xf32>
    %cst_14 = arith.constant dense<0.000000e+00> : vector<8x128xf32>
    %26 = tpu.matmul %2, %25, %cst_14 {dimension_numbers = #tpu.dot_dimension_numbers<[1], [0], [0], [1], [0, 0, 1, 1], [], []>} : vector<8x128xf32>, vector<128x128xf32>, vector<8x128xf32> -> vector<8x128xf32>
    %c0_15 = arith.constant 0 : index
    %c0_16 = arith.constant 0 : index
    %27 = vector.load %arg8[%c0_15, %c0_16] : memref<1x128xf32, #tpu.memory_space<vmem>>, vector<1x128xf32>
    %28 = vector.broadcast %27 : vector<1x128xf32> to vector<8x128xf32>
    %29 = arith.addf %26, %28 : vector<8x128xf32>
    %30 = arith.mulf %13, %29 : vector<8x128xf32>
    %31 = arith.addf %24, %30 : vector<8x128xf32>
    %32 = math.tanh %31 : vector<8x128xf32>
    %c128_i32 = arith.constant 128 : i32
    %33 = arith.muli %arg1, %c128_i32 : i32
    %c128_i32_17 = arith.constant 128 : i32
    %34 = arith.addi %c128_i32_17, %33 : i32
    %35 = tpu.assume_multiple %34, 128 : i32
    %c0_18 = arith.constant 0 : index
    %36 = arith.index_cast %35 : i32 to index
    %37 = vector.load %arg2[%c0_18, %36] : memref<8x256xf32, #tpu.memory_space<vmem>>, vector<8x128xf32>
    %38 = arith.subf %37, %32 : vector<8x128xf32>
    %39 = arith.mulf %19, %38 : vector<8x128xf32>
    %40 = arith.addf %32, %39 : vector<8x128xf32>
    %c0_19 = arith.constant 0 : index
    %c0_20 = arith.constant 0 : index
    %41 = vector.load %arg9[%c0_19, %c0_20] : memref<8x128xf32, #tpu.memory_space<vmem>>, vector<8x128xf32>
    tpu.vector_store %arg9[%c0_19, %c0_20], %40 {strides = array<i32>} : memref<8x128xf32, #tpu.memory_space<vmem>>, vector<8x128xf32>,
    return
  }
  func.func @transform_0(%arg0: i32, %arg1: i32) -> (i32, i32) {
    %c0_i32 = arith.constant 0 : i32
    %c0_i32_0 = arith.constant 0 : i32
    return %arg0, %c0_i32 : i32, i32
  }
  func.func @transform_1(%arg0: i32, %arg1: i32) -> (i32, i32) {
    %c0_i32 = arith.constant 0 : i32
    %c0_i32_0 = arith.constant 0 : i32
    return %c0_i32, %arg1 : i32, i32
  }
  func.func @transform_2(%arg0: i32, %arg1: i32) -> (i32, i32) {
    %c0_i32 = arith.constant 0 : i32
    %c0_i32_0 = arith.constant 0 : i32
    return %c0_i32, %arg1 : i32, i32
  }
  func.func @transform_3(%arg0: i32, %arg1: i32) -> (i32, i32) {
    %c0_i32 = arith.constant 0 : i32
    %c0_i32_0 = arith.constant 0 : i32
    return %c0_i32, %arg1 : i32, i32
  }
  func.func @transform_4(%arg0: i32, %arg1: i32) -> (i32, i32) {
    %c0_i32 = arith.constant 0 : i32
    %c0_i32_0 = arith.constant 0 : i32
    return %c0_i32, %arg1 : i32, i32
  }
  func.func @transform_5(%arg0: i32, %arg1: i32) -> (i32, i32) {
    %c0_i32 = arith.constant 0 : i32
    %c0_i32_0 = arith.constant 0 : i32
    return %c0_i32, %arg1 : i32, i32
  }
  func.func @transform_6(%arg0: i32, %arg1: i32) -> (i32, i32) {
    %c0_i32 = arith.constant 0 : i32
    %c0_i32_0 = arith.constant 0 : i32
    return %c0_i32, %arg1 : i32, i32
  }
  func.func @transform_7(%arg0: i32, %arg1: i32) -> (i32, i32) {
    %c0_i32 = arith.constant 0 : i32
    return %arg0, %arg1 : i32, i32
  }
}

</mosaic_0001>

<llo_original>
// kernel: gru_cell.1
$region0: #{gru_cell.1}
  #allocation0 [shape = 'u32[]', space=smem, size = 0x4, offset = 0x4, fixed_abs, tag = 'smem constant byte address 0x4 - core index']
  #allocation1 [shape = 'u32[144,128]{1,0:T(1,128)}', space=vmem, size = 0x12000, scoped, tag = 'internal scratch']
  %s0 = inlined_call_operand.vmem [shape: f32[8,256], index: 0, kind: input, shape index: {}]
  %s1 = inlined_call_operand.vmem [shape: f32[256,256], index: 1, kind: input, shape index: {}]
  %s2 = inlined_call_operand.vmem [shape: f32[128,128], index: 2, kind: input, shape index: {}]
  %s3 = inlined_call_operand.vmem [shape: f32[128,128], index: 3, kind: input, shape index: {}]
  %s4 = inlined_call_operand.vmem [shape: f32[1,256], index: 4, kind: input, shape index: {}]
  %s5 = inlined_call_operand.vmem [shape: f32[1,128], index: 5, kind: input, shape index: {}]
  %s6 = inlined_call_operand.vmem [shape: f32[1,128], index: 6, kind: input, shape index: {}]
  %s7 = inlined_call_operand.hbm [shape: f32[8,128], index: 7, kind: output, shape index: {}]
  %s8 = sld [smem:[#allocation0]]
  $region38: #{gru_cell.1} parent=0
    _
  %s10 = ssub.s32 1, %s8
  %s11 = scalar_select 0, %s10, %s8
  $region1: #{gru_cell.1} parent=0
    #allocation2 [shape = 'u8[4096]{0}', space=vmem, size = 0x1000, scoped, tag = 'output window, operand 0, single buffered']
    #allocation3 [shape = 's32[1]{0}', space=sflag, size = 0x4, scoped, tag = 'scoped memory for gru_cell.1']
    %12 = vsyncpa [#allocation3], 0
    // Predicated region
    $region2: #{gru_cell.1} parent=1 // pred_check
      _
    $region3: #{gru_cell.1} parent=1 // pred_check_branch
      %14 = sbr.rel (0) target = $region5
    $region4: #{gru_cell.1} parent=1 // pred_region
      _
    $region5: #{gru_cell.1} parent=1 // pred_fallthru
      _
    // Predicated region
    $region6: #{gru_cell.1} parent=1 // pred_check
      _
    $region7: #{gru_cell.1} parent=1 // pred_check_branch
      %16 = sbr.rel (0) target = $region9
    $region8: #{gru_cell.1} parent=1 // pred_region
      _
    $region9: #{gru_cell.1} parent=1 // pred_fallthru
      _
    // Predicated region
    $region10: #{gru_cell.1} parent=1 // pred_check
      _
    $region11: #{gru_cell.1} parent=1 // pred_check_branch
      %18 = sbr.rel (0) target = $region13
    $region12: #{gru_cell.1} parent=1 // pred_region
      _
    $region13: #{gru_cell.1} parent=1 // pred_fallthru
      _
    // Predicated region
    $region14: #{gru_cell.1} parent=1 // pred_check
      _
    $region15: #{gru_cell.1} parent=1 // pred_check_branch
      %20 = sbr.rel (0) target = $region17
    $region16: #{gru_cell.1} parent=1 // pred_region
      _
    $region17: #{gru_cell.1} parent=1 // pred_fallthru
      _
    // Predicated region
    $region18: #{gru_cell.1} parent=1 // pred_check
      _
    $region19: #{gru_cell.1} parent=1 // pred_check_branch
      %22 = sbr.rel (0) target = $region21
    $region20: #{gru_cell.1} parent=1 // pred_region
      _
    $region21: #{gru_cell.1} parent=1 // pred_fallthru
      _
    // Predicated region
    $region22: #{gru_cell.1} parent=1 // pred_check
      _
    $region23: #{gru_cell.1} parent=1 // pred_check_branch
      %24 = sbr.rel (0) target = $region25
    $region24: #{gru_cell.1} parent=1 // pred_region
      _
    $region25: #{gru_cell.1} parent=1 // pred_fallthru
      _
    // Predicated region
    $region26: #{gru_cell.1} parent=1 // pred_check
      _
    $region27: #{gru_cell.1} parent=1 // pred_check_branch
      %26 = sbr.rel (0) target = $region29
    $region28: #{gru_cell.1} parent=1 // pred_region
      _
    $region29: #{gru_cell.1} parent=1 // pred_fallthru
      _
    %v27 = vld [vmem:[%s0] sm:$0xff]
    %v28 = vld [vmem:[%s0 + $0x8] sm:$0xff]
    %v29 = vld [vmem:[%s1] sm:$0xff]
    %v30 = vld [vmem:[%s1 + $0x8] sm:$0xff]
    %v31 = vld [vmem:[%s1 + $0x10] sm:$0xff]
    %v32 = vld [vmem:[%s1 + $0x18] sm:$0xff]
    %v33 = vld [vmem:[%s1 + $0x20] sm:$0xff]
    %v34 = vld [vmem:[%s1 + $0x28] sm:$0xff]
    %v35 = vld [vmem:[%s1 + $0x30] sm:$0xff]
    %v36 = vld [vmem:[%s1 + $0x38] sm:$0xff]
    %v37 = vld [vmem:[%s1 + $0x40] sm:$0xff]
    %v38 = vld [vmem:[%s1 + $0x48] sm:$0xff]
    %v39 = vld [vmem:[%s1 + $0x50] sm:$0xff]
    %v40 = vld [vmem:[%s1 + $0x58] sm:$0xff]
    %v41 = vld [vmem:[%s1 + $0x60] sm:$0xff]
    %v42 = vld [vmem:[%s1 + $0x68] sm:$0xff]
    %v43 = vld [vmem:[%s1 + $0x70] sm:$0xff]
    %v44 = vld [vmem:[%s1 + $0x78] sm:$0xff]
    %v45 = vld [vmem:[%s1 + $0x80] sm:$0xff]
    %v46 = vld [vmem:[%s1 + $0x88] sm:$0xff]
    %v47 = vld [vmem:[%s1 + $0x90] sm:$0xff]
    %v48 = vld [vmem:[%s1 + $0x98] sm:$0xff]
    %v49 = vld [vmem:[%s1 + $0xa0] sm:$0xff]
    %v50 = vld [vmem:[%s1 + $0xa8] sm:$0xff]
    %v51 = vld [vmem:[%s1 + $0xb0] sm:$0xff]
    %v52 = vld [vmem:[%s1 + $0xb8] sm:$0xff]
    %v53 = vld [vmem:[%s1 + $0xc0] sm:$0xff]
    %v54 = vld [vmem:[%s1 + $0xc8] sm:$0xff]
    %v55 = vld [vmem:[%s1 + $0xd0] sm:$0xff]
    %v56 = vld [vmem:[%s1 + $0xd8] sm:$0xff]
    %v57 = vld [vmem:[%s1 + $0xe0] sm:$0xff]
    %v58 = vld [vmem:[%s1 + $0xe8] sm:$0xff]
    %v59 = vld [vmem:[%s1 + $0xf0] sm:$0xff]
    %v60 = vld [vmem:[%s1 + $0xf8] sm:$0xff]
    %v61 = vld [vmem:[%s1 + $0x100] sm:$0xff]
    %v62 = vld [vmem:[%s1 + $0x108] sm:$0xff]
    %v63 = vld [vmem:[%s1 + $0x110] sm:$0xff]
    %v64 = vld [vmem:[%s1 + $0x118] sm:$0xff]
    %v65 = vld [vmem:[%s1 + $0x120] sm:$0xff]
    %v66 = vld [vmem:[%s1 + $0x128] sm:$0xff]
    %v67 = vld [vmem:[%s1 + $0x130] sm:$0xff]
    %v68 = vld [vmem:[%s1 + $0x138] sm:$0xff]
    %v69 = vld [vmem:[%s1 + $0x140] sm:$0xff]
    %v70 = vld [vmem:[%s1 + $0x148] sm:$0xff]
    %v71 = vld [vmem:[%s1 + $0x150] sm:$0xff]
    %v72 = vld [vmem:[%s1 + $0x158] sm:$0xff]
    %v73 = vld [vmem:[%s1 + $0x160] sm:$0xff]
    %v74 = vld [vmem:[%s1 + $0x168] sm:$0xff]
    %v75 = vld [vmem:[%s1 + $0x170] sm:$0xff]
    %v76 = vld [vmem:[%s1 + $0x178] sm:$0xff]
    %v77 = vld [vmem:[%s1 + $0x180] sm:$0xff]
    %v78 = vld [vmem:[%s1 + $0x188] sm:$0xff]
    %v79 = vld [vmem:[%s1 + $0x190] sm:$0xff]
    %v80 = vld [vmem:[%s1 + $0x198] sm:$0xff]
    %v81 = vld [vmem:[%s1 + $0x1a0] sm:$0xff]
    %v82 = vld [vmem:[%s1 + $0x1a8] sm:$0xff]
    %v83 = vld [vmem:[%s1 + $0x1b0] sm:$0xff]
    %v84 = vld [vmem:[%s1 + $0x1b8] sm:$0xff]
    %v85 = vld [vmem:[%s1 + $0x1c0] sm:$0xff]
    %v86 = vld [vmem:[%s1 + $0x1c8] sm:$0xff]
    %v87 = vld [vmem:[%s1 + $0x1d0] sm:$0xff]
    %v88 = vld [vmem:[%s1 + $0x1d8] sm:$0xff]
    %v89 = vld [vmem:[%s1 + $0x1e0] sm:$0xff]
    %v90 = vld [vmem:[%s1 + $0x1e8] sm:$0xff]
    %v91 = vld [vmem:[%s1 + $0x1f0] sm:$0xff]
    %v92 = vld [vmem:[%s1 + $0x1f8] sm:$0xff]
    %v93 = vld [vmem:[%s4] sm:$0x3]
    %v95 = vlaneseq
    %v96 = vshrl.u32 %v95, 7
    %v97 = vsub.s32 0, %v96
    %v98 = vrot.slane %v93, %v97
    %v99 = vlaneseq
    %v100 = vshrl.u32 %v99, 7
    %v101 = vsub.s32 1, %v100
    %v102 = vrot.slane %v93, %v101
    %105 = vmatprep.subr.mxu0 %v30
    %106 = vmatpush1.msra.mxu0 %v29
    %107 = vmatprep.subr.mxu0 %v32
    %108 = vmatpush1.msra.mxu0 %v31
    %109 = vmatprep.subr.mxu0 %v34
    %110 = vmatpush1.msra.mxu0 %v33
    %111 = vmatprep.subr.mxu0 %v36
    %112 = vmatpush1.msra.mxu0 %v35
    %113 = vmatprep.subr.mxu0 %v38
    %114 = vmatpush1.msra.mxu0 %v37
    %115 = vmatprep.subr.mxu0 %v40
    %116 = vmatpush1.msra.mxu0 %v39
    %117 = vmatprep.subr.mxu0 %v42
    %118 = vmatpush1.msra.mxu0 %v41
    %119 = vmatprep.subr.mxu0 %v44
    %120 = vmatpush1.msra.mxu0 %v43
    %121 = vmatprep.subr.mxu0 %v46
    %122 = vmatpush1.msra.mxu0 %v45
    %123 = vmatprep.subr.mxu0 %v48
    %124 = vmatpush1.msra.mxu0 %v47
    %125 = vmatprep.subr.mxu0 %v50
    %126 = vmatpush1.msra.mxu0 %v49
    %127 = vmatprep.subr.mxu0 %v52
    %128 = vmatpush1.msra.mxu0 %v51
    %129 = vmatprep.subr.mxu0 %v54
    %130 = vmatpush1.msra.mxu0 %v53
    %131 = vmatprep.subr.mxu0 %v56
    %132 = vmatpush1.msra.mxu0 %v55
    %133 = vmatprep.subr.mxu0 %v58
    %134 = vmatpush1.msra.mxu0 %v57
    %135 = vmatprep.subr.mxu0 %v60
    %136 = vmatpush1.msra.mxu0 %v59
    %137 = vmatprep.subr.mxu0 %v62
    %138 = vmatpush1.msra.mxu0 %v61
    %139 = vmatprep.subr.mxu0 %v64
    %140 = vmatpush1.msra.mxu0 %v63
    %141 = vmatprep.subr.mxu0 %v66
    %142 = vmatpush1.msra.mxu0 %v65
    %143 = vmatprep.subr.mxu0 %v68
    %144 = vmatpush1.msra.mxu0 %v67
    %145 = vmatprep.subr.mxu0 %v70
    %146 = vmatpush1.msra.mxu0 %v69
    %147 = vmatprep.subr.mxu0 %v72
    %148 = vmatpush1.msra.mxu0 %v71
    %149 = vmatprep.subr.mxu0 %v74
    %150 = vmatpush1.msra.mxu0 %v73
    %151 = vmatprep.subr.mxu0 %v76
    %152 = vmatpush1.msra.mxu0 %v75
    %153 = vmatprep.subr.mxu0 %v78
    %154 = vmatpush1.msra.mxu0 %v77
    %155 = vmatprep.subr.mxu0 %v80
    %156 = vmatpush1.msra.mxu0 %v79
    %157 = vmatprep.subr.mxu0 %v82
    %158 = vmatpush1.msra.mxu0 %v81
    %159 = vmatprep.subr.mxu0 %v84
    %160 = vmatpush1.msra.mxu0 %v83
    %161 = vmatprep.subr.mxu0 %v86
    %162 = vmatpush1.msra.mxu0 %v85
    %163 = vmatprep.subr.mxu0 %v88
    %164 = vmatpush1.msra.mxu0 %v87
    %165 = vmatprep.subr.mxu0 %v90
    %166 = vmatpush1.msra.mxu0 %v89
    %167 = vmatprep.subr.mxu0 %v92
    %168 = vmatpush1.msra.mxu0 %v91
    %169 = vmatprep.mubr.f32.mxu0 %v28
    %170 = vmatmul.mubr.f32.gmra.mrb[0].mxu0 %v27
    %v171 = vpop.f32.mrb[0].mxu0
    %v172 = vadd.f32 %v98, %v171
    %v173 = vpop.f32.mrb[0].mxu0
    %v174 = vadd.f32 %v102, %v173
    %175 = vdwg.mxu0
    %v176 = vxor.u32 %v172, 2147483648
    %v177 = vmul.f32 %v176, 1.442695
    %v178 = vpow.pop %v177
    %v179 = vadd.f32 %v178, 1.0
    %v180 = vrcp.pop %v179
    %v181 = vmul.f32 1.0, %v180
    %v182 = vxor.u32 %v174, 2147483648
    %v183 = vmul.f32 %v182, 1.442695
    %v184 = vpow.pop %v183
    %v185 = vadd.f32 %v184, 1.0
    %v186 = vrcp.pop %v185
    %v187 = vmul.f32 1.0, %v186
    %v188 = vld [vmem:[%s2] sm:$0xff]
    %v189 = vld [vmem:[%s2 + $0x8] sm:$0xff]
    %v190 = vld [vmem:[%s2 + $0x10] sm:$0xff]
    %v191 = vld [vmem:[%s2 + $0x18] sm:$0xff]
    %v192 = vld [vmem:[%s2 + $0x20] sm:$0xff]
    %v193 = vld [vmem:[%s2 + $0x28] sm:$0xff]
    %v194 = vld [vmem:[%s2 + $0x30] sm:$0xff]
    %v195 = vld [vmem:[%s2 + $0x38] sm:$0xff]
    %v196 = vld [vmem:[%s2 + $0x40] sm:$0xff]
    %v197 = vld [vmem:[%s2 + $0x48] sm:$0xff]
    %v198 = vld [vmem:[%s2 + $0x50] sm:$0xff]
    %v199 = vld [vmem:[%s2 + $0x58] sm:$0xff]
    %v200 = vld [vmem:[%s2 + $0x60] sm:$0xff]
    %v201 = vld [vmem:[%s2 + $0x68] sm:$0xff]
    %v202 = vld [vmem:[%s2 + $0x70] sm:$0xff]
    %v203 = vld [vmem:[%s2 + $0x78] sm:$0xff]
    %v204 = vld [vmem:[%s5] sm:$0x1]
    %v206 = vlaneseq
    %v207 = vshrl.u32 %v206, 7
    %v208 = vsub.s32 0, %v207
    %v209 = vrot.slane %v204, %v208
    %211 = vmatprep.subr.mxu0 0.0
    %212 = vmatpush1.msra.mxu0 %v188
    %213 = vmatprep.subr.mxu0 0.0
    %214 = vmatpush1.msra.mxu0 %v189
    %215 = vmatprep.subr.mxu0 0.0
    %216 = vmatpush1.msra.mxu0 %v190
    %217 = vmatprep.subr.mxu0 0.0
    %218 = vmatpush1.msra.mxu0 %v191
    %219 = vmatprep.subr.mxu0 0.0
    %220 = vmatpush1.msra.mxu0 %v192
    %221 = vmatprep.subr.mxu0 0.0
    %222 = vmatpush1.msra.mxu0 %v193
    %223 = vmatprep.subr.mxu0 0.0
    %224 = vmatpush1.msra.mxu0 %v194
    %225 = vmatprep.subr.mxu0 0.0
    %226 = vmatpush1.msra.mxu0 %v195
    %227 = vmatprep.subr.mxu0 0.0
    %228 = vmatpush1.msra.mxu0 %v196
    %229 = vmatprep.subr.mxu0 0.0
    %230 = vmatpush1.msra.mxu0 %v197
    %231 = vmatprep.subr.mxu0 0.0
    %232 = vmatpush1.msra.mxu0 %v198
    %233 = vmatprep.subr.mxu0 0.0
    %234 = vmatpush1.msra.mxu0 %v199
    %235 = vmatprep.subr.mxu0 0.0
    %236 = vmatpush1.msra.mxu0 %v200
    %237 = vmatprep.subr.mxu0 0.0
    %238 = vmatpush1.msra.mxu0 %v201
    %239 = vmatprep.subr.mxu0 0.0
    %240 = vmatpush1.msra.mxu0 %v202
    %241 = vmatprep.subr.mxu0 0.0
    %242 = vmatpush1.msra.mxu0 %v203
    %243 = vmatprep.subr.mxu0 0.0
    %244 = vmatpush1.msra.mxu0 0.0
    %245 = vmatprep.subr.mxu0 0.0
    %246 = vmatpush1.msra.mxu0 0.0
    %247 = vmatprep.subr.mxu0 0.0
    %248 = vmatpush1.msra.mxu0 0.0
    %249 = vmatprep.subr.mxu0 0.0
    %250 = vmatpush1.msra.mxu0 0.0
    %251 = vmatprep.subr.mxu0 0.0
    %252 = vmatpush1.msra.mxu0 0.0
    %253 = vmatprep.subr.mxu0 0.0
    %254 = vmatpush1.msra.mxu0 0.0
    %255 = vmatprep.subr.mxu0 0.0
    %256 = vmatpush1.msra.mxu0 0.0
    %257 = vmatprep.subr.mxu0 0.0
    %258 = vmatpush1.msra.mxu0 0.0
    %259 = vmatprep.subr.mxu0 0.0
    %260 = vmatpush1.msra.mxu0 0.0
    %261 = vmatprep.subr.mxu0 0.0
    %262 = vmatpush1.msra.mxu0 0.0
    %263 = vmatprep.subr.mxu0 0.0
    %264 = vmatpush1.msra.mxu0 0.0
    %265 = vmatprep.subr.mxu0 0.0
    %266 = vmatpush1.msra.mxu0 0.0
    %267 = vmatprep.subr.mxu0 0.0
    %268 = vmatpush1.msra.mxu0 0.0
    %269 = vmatprep.subr.mxu0 0.0
    %270 = vmatpush1.msra.mxu0 0.0
    %271 = vmatprep.subr.mxu0 0.0
    %272 = vmatpush1.msra.mxu0 0.0
    %273 = vmatprep.subr.mxu0 0.0
    %274 = vmatpush1.msra.mxu0 0.0
    %275 = vmatprep.mubr.f32.mxu0 0.0
    %276 = vmatmul.mubr.f32.gmra.mrb[0].mxu0 %v27
    %v277 = vpop.f32.mrb[0].mxu0
    %v278 = vadd.f32 %v209, %v277
    %v279 = vpop.f32.mrb[0].mxu0
    %280 = vdwg.mxu0
    %v281 = vld [vmem:[%s3] sm:$0xff]
    %v282 = vld [vmem:[%s3 + $0x8] sm:$0xff]
    %v283 = vld [vmem:[%s3 + $0x10] sm:$0xff]
    %v284 = vld [vmem:[%s3 + $0x18] sm:$0xff]
    %v285 = vld [vmem:[%s3 + $0x20] sm:$0xff]
    %v286 = vld [vmem:[%s3 + $0x28] sm:$0xff]
    %v287 = vld [vmem:[%s3 + $0x30] sm:$0xff]
    %v288 = vld [vmem:[%s3 + $0x38] sm:$0xff]
    %v289 = vld [vmem:[%s3 + $0x40] sm:$0xff]
    %v290 = vld [vmem:[%s3 + $0x48] sm:$0xff]
    %v291 = vld [vmem:[%s3 + $0x50] sm:$0xff]
    %v292 = vld [vmem:[%s3 + $0x58] sm:$0xff]
    %v293 = vld [vmem:[%s3 + $0x60] sm:$0xff]
    %v294 = vld [vmem:[%s3 + $0x68] sm:$0xff]
    %v295 = vld [vmem:[%s3 + $0x70] sm:$0xff]
    %v296 = vld [vmem:[%s3 + $0x78] sm:$0xff]
    %v297 = vld [vmem:[%s6] sm:$0x1]
    %v299 = vlaneseq
    %v300 = vshrl.u32 %v299, 7
    %v301 = vsub.s32 0, %v300
    %v302 = vrot.slane %v297, %v301
    %304 = vmatprep.subr.mxu0 0.0
    %305 = vmatpush1.msra.mxu0 %v281
    %306 = vmatprep.subr.mxu0 0.0
    %307 = vmatpush1.msra.mxu0 %v282
    %308 = vmatprep.subr.mxu0 0.0
    %309 = vmatpush1.msra.mxu0 %v283
    %310 = vmatprep.subr.mxu0 0.0
    %311 = vmatpush1.msra.mxu0 %v284
    %312 = vmatprep.subr.mxu0 0.0
    %313 = vmatpush1.msra.mxu0 %v285
    %314 = vmatprep.subr.mxu0 0.0
    %315 = vmatpush1.msra.mxu0 %v286
    %316 = vmatprep.subr.mxu0 0.0
    %317 = vmatpush1.msra.mxu0 %v287
    %318 = vmatprep.subr.mxu0 0.0
    %319 = vmatpush1.msra.mxu0 %v288
    %320 = vmatprep.subr.mxu0 0.0
    %321 = vmatpush1.msra.mxu0 %v289
    %322 = vmatprep.subr.mxu0 0.0
    %323 = vmatpush1.msra.mxu0 %v290
    %324 = vmatprep.subr.mxu0 0.0
    %325 = vmatpush1.msra.mxu0 %v291
    %326 = vmatprep.subr.mxu0 0.0
    %327 = vmatpush1.msra.mxu0 %v292
    %328 = vmatprep.subr.mxu0 0.0
    %329 = vmatpush1.msra.mxu0 %v293
    %330 = vmatprep.subr.mxu0 0.0
    %331 = vmatpush1.msra.mxu0 %v294
    %332 = vmatprep.subr.mxu0 0.0
    %333 = vmatpush1.msra.mxu0 %v295
    %334 = vmatprep.subr.mxu0 0.0
    %335 = vmatpush1.msra.mxu0 %v296
    %336 = vmatprep.subr.mxu0 0.0
    %337 = vmatpush1.msra.mxu0 0.0
    %338 = vmatprep.subr.mxu0 0.0
    %339 = vmatpush1.msra.mxu0 0.0
    %340 = vmatprep.subr.mxu0 0.0
    %341 = vmatpush1.msra.mxu0 0.0
    %342 = vmatprep.subr.mxu0 0.0
    %343 = vmatpush1.msra.mxu0 0.0
    %344 = vmatprep.subr.mxu0 0.0
    %345 = vmatpush1.msra.mxu0 0.0
    %346 = vmatprep.subr.mxu0 0.0
    %347 = vmatpush1.msra.mxu0 0.0
    %348 = vmatprep.subr.mxu0 0.0
    %349 = vmatpush1.msra.mxu0 0.0
    %350 = vmatprep.subr.mxu0 0.0
    %351 = vmatpush1.msra.mxu0 0.0
    %352 = vmatprep.subr.mxu0 0.0
    %353 = vmatpush1.msra.mxu0 0.0
    %354 = vmatprep.subr.mxu0 0.0
    %355 = vmatpush1.msra.mxu0 0.0
    %356 = vmatprep.subr.mxu0 0.0
    %357 = vmatpush1.msra.mxu0 0.0
    %358 = vmatprep.subr.mxu0 0.0
    %359 = vmatpush1.msra.mxu0 0.0
    %360 = vmatprep.subr.mxu0 0.0
    %361 = vmatpush1.msra.mxu0 0.0
    %362 = vmatprep.subr.mxu0 0.0
    %363 = vmatpush1.msra.mxu0 0.0
    %364 = vmatprep.subr.mxu0 0.0
    %365 = vmatpush1.msra.mxu0 0.0
    %366 = vmatprep.subr.mxu0 0.0
    %367 = vmatpush1.msra.mxu0 0.0
    %368 = vmatprep.mubr.f32.mxu0 0.0
    %369 = vmatmul.mubr.f32.gmra.mrb[0].mxu0 %v28
    %v370 = vpop.f32.mrb[0].mxu0
    %v371 = vadd.f32 %v302, %v370
    %v372 = vpop.f32.mrb[0].mxu0
    %373 = vdwg.mxu0
    %v374 = vmul.f32 %v181, %v371
    %v375 = vadd.f32 %v278, %v374
    %v376 = vtanh.pop %v375
    %s377 = smul.u32 0, 128
    %s378 = sadd.s32 %s377, 128
    %s379 = sshra.s32 %s378, 7
    %s380 = sand.u32 %s378, 127
    %s381 = smul.addr %s379, 8
    %s382 = scalar_lea.vmem %s0, %s381
    %v383 = vld [vmem:[%s382] sm:$0xff]
    %v384 = vsub.f32 %v383, %v376
    %v385 = vmul.f32 %v187, %v384
    %v386 = vadd.f32 %v376, %v385
    %387 = vst [vmem:[#allocation2] sm:$0xff] %v386
    // Predicated region
    $region30: #{gru_cell.1} parent=1 // pred_check
      _
    $region31: #{gru_cell.1} parent=1 // pred_check_branch
      %389 = sbr.rel (0) target = $region33
    $region32: #{gru_cell.1} parent=1 // pred_region
      %s391 = ssub.s32 128, 128
      %392 = vsyncadd [#allocation3], %s391
      %s394 = sshll.u32 [#allocation2], 4
      %s395 = int_to_ptr.vmem [resolvable:$true] %s394
      %397 = dma.vmem_to_hbm [thread:$0]  %s395, 128, %s7, [#allocation3]
    $region33: #{gru_cell.1} parent=1 // pred_fallthru
      _
    // Predicated region
    $region34: #{gru_cell.1} parent=1 // pred_check
      _
    $region35: #{gru_cell.1} parent=1 // pred_check_branch
      %399 = sbr.rel (0) target = $region37
    $region36: #{gru_cell.1} parent=1 // pred_region
      %400 = dma.done [#allocation3], 128
    $region37: #{gru_cell.1} parent=1 // pred_fallthru
      _
    %401 = vsyncpa [#allocation3], 1

</llo_original>
